<compile_context>
chip_gen: v5e
topology: v5e:2x2
jax: 0.10.0
libtpu: 0.0.40
codegen_flags: <defaults>
</compile_context>

<pallas_src>
import jax
import jax.numpy as jnp
from jax import lax
from jax.experimental import pallas as pl


# ----------------------------- Pallas kernels ------------------------------

def make_arrival_time_kernel(beta_space, beta_time, beta_z, t0, t1, phase_scale):
    """Fused sigmoids + traveltime-MLP + station selection + phase scale + event-time add."""

    def kernel(locs_ref, times_ref, p_ref, w1z_ref, w1l_ref, b1_ref,
               w2_ref, b2_ref, onehot_ref, time_ref):
        # event_locs = sigmoid(beta_space * param)                       (E, 3)
        el = jax.nn.sigmoid(beta_space * locs_ref[...])
        # event_times = sigmoid(beta_time * param) * (t1 - t0) + t0      (E, 1)
        et = jax.nn.sigmoid(beta_time * times_ref[...]) * (t1 - t0) + t0
        # z = sigmoid(beta_z * model_traveltime_p)                       (1, L)
        z = jax.nn.sigmoid(beta_z * p_ref[...])
        # Xin @ W1.T  ==  z @ W1[:, :L].T (shared by all events)  +  el @ W1[:, L:].T
        zc = jnp.dot(z, w1z_ref[...], preferred_element_type=jnp.float32)          # (1, H)
        h = jnp.tanh(jnp.dot(el, w1l_ref[...], preferred_element_type=jnp.float32)
                     + zc + b1_ref[...])                                            # (E, H)
        temp = (jnp.dot(h, w2_ref[...], preferred_element_type=jnp.float32)
                + b2_ref[...])                                                      # (E, S)
        # temp[:, station_index] via exact one-hot contraction (stays on the MXU).
        sel = jnp.dot(temp, onehot_ref[...], preferred_element_type=jnp.float32)    # (E, 1)
        time_ref[...] = sel * phase_scale + et

    return kernel


def sort_kernel(trow_ref, tcol_ref, vals_ref, idx_ref):
    """Stable ascending sort of E values (torch.sort) via O(E^2) rank + one-hot scatter."""
    tr = trow_ref[...]                                    # (1, E): t_j on lanes
    tc = tcol_ref[...]                                    # (E, 1): t_i on sublanes
    E = tr.shape[1]
    i_idx = lax.broadcasted_iota(jnp.int32, (E, E), 0)    # source index i (rows)
    j_idx = lax.broadcasted_iota(jnp.int32, (E, E), 1)    # compare index j (lanes)
    t_i = jnp.broadcast_to(tc, (E, E))                    # [i, j] = t_i
    t_j = jnp.broadcast_to(tr, (E, E))                    # [i, j] = t_j
    # j is ordered strictly before i (stable tie-break on the original index)
    before = (t_j < t_i) | ((t_j == t_i) & (j_idx < i_idx))
    rank = jnp.sum(before.astype(jnp.float32), axis=1, keepdims=True)       # (E, 1)
    onehot = jnp.broadcast_to(rank.astype(jnp.int32), (E, E)) == j_idx      # row i -> col rank_i
    vals_ref[...] = jnp.sum(jnp.where(onehot, t_i, 0.0),
                            axis=0, keepdims=True)                          # (1, E) sorted values
    idx_ref[...] = jnp.sum(jnp.where(onehot, i_idx.astype(jnp.float32), 0.0),
                           axis=0, keepdims=True).astype(jnp.int32)         # (1, E) sort indices


# ------------------------------- wrappers -----------------------------------

def _full_spec(shape):
    n = len(shape)
    return pl.BlockSpec(shape, lambda i, _n=n: (0,) * _n)


def arrival_and_sort(params, cfg, station_index, phase="P"):
    locs = params["event_locs"]                          # (E, 3)
    times = params["event_times"].reshape(-1, 1)         # (E, 1)
    p = params["model_traveltime_p"].reshape(1, -1)      # (1, L)
    w1, b1 = params["tt_w1"], params["tt_b1"]            # (H, L+3), (H,)
    w2, b2 = params["tt_w2"], params["tt_b2"]            # (S, H), (S,)
    E, L = locs.shape[0], p.shape[1]
    H, S = w1.shape[0], w2.shape[0]

    t0, t1 = cfg["t(s)"]
    phase_scale = 1.0 if phase == "P" else cfg["vel"]["S"] / cfg["vel"]["P"]
    kernel = make_arrival_time_kernel(float(cfg["beta_space"]), float(cfg["beta_time"]),
                                      float(cfg["beta_z"]), float(t0), float(t1),
                                      float(phase_scale))

    # Pre-transpose the frozen traveltime-MLP weights once (output features on lanes).
    w1z = w1[:, :L].T                                    # (L, H) — shared latent-z part
    w1l = w1[:, L:].T                                    # (3, H) — event-location part
    b1r = b1.reshape(1, H)
    w2t = w2.T                                           # (H, S)
    b2r = b2.reshape(1, S)
    onehot = jax.nn.one_hot(station_index, S, dtype=jnp.float32).reshape(S, 1)

    args = (locs, times, p, w1z, w1l, b1r, w2t, b2r, onehot)
    time_col = pl.pallas_call(
        kernel,
        out_shape=jax.ShapeDtypeStruct((E, 1), jnp.float32),
        grid=(1,),
        in_specs=[_full_spec(a.shape) for a in args],
        out_specs=_full_spec((E, 1)),
    )(*args)

    # torch.sort(time): values + indices, computed in a second tiny Pallas kernel.
    time_row = time_col.reshape(1, E)
    vals, idx = pl.pallas_call(
        sort_kernel,
        out_shape=(jax.ShapeDtypeStruct((1, E), jnp.float32),
                   jax.ShapeDtypeStruct((1, E), jnp.int32)),
        grid=(1,),
        in_specs=[_full_spec((1, E)), _full_spec((E, 1))],
        out_specs=(_full_spec((1, E)), _full_spec((1, E))),
    )(time_row, time_col)
    return vals.reshape(E), idx.reshape(E)


def make_forward(cfg, phase="P"):
    # cfg / phase stay Python constants (baked into the kernel closure), params & index traced.
    def fwd(params, station_index):
        return arrival_and_sort(params, cfg, station_index, phase=phase)
    return jax.jit(fwd)


# ----------------------------- reference (JAX) ------------------------------

def assignment_reference(params, cfg, station_index, phase="P"):
    el = jax.nn.sigmoid(cfg["beta_space"] * params["event_locs"])
    et = jax.nn.sigmoid(cfg["beta_time"] * params["event_times"])
    t0, t1 = cfg["t(s)"]
    et = et * (t1 - t0) + t0
    z = jax.nn.sigmoid(cfg["beta_z"] * params["model_traveltime_p"])
    E = el.shape[0]
    xin = jnp.concatenate([jnp.tile(z[None, :], (E, 1)), el], axis=1)
    h = jnp.tanh(xin @ params["tt_w1"].T + params["tt_b1"])
    temp = h @ params["tt_w2"].T + params["tt_b2"]
    t = temp[:, station_index]
    if phase == "S":
        t = t / cfg["vel"]["P"] * cfg["vel"]["S"]
    t = t + et
    order = jnp.argsort(t)
    return t[order], order, t


# --------------------------------- main --------------------------------------

if __name__ == "__main__":
    E, L, H, S = 16, 32, 64, 8    # n_event_max, wave_speed hidden dim, surrogate MLP hidden, n stations
    cfg = {
        "n_event_max": E,
        "wave_speed_model_hidden_dim": L,
        "beta_time": 5.0, "beta_space": 3.0, "beta_z": 2.0,
        "t(s)": (0.0, 100.0),
        "x(km)": (0.0, 50.0), "y(km)": (0.0, 50.0), "z(km)": (0.0, 20.0),
        "P_phase": True, "S_phase": True,
        "vel": {"P": 6.0, "S": 3.5},
    }
    key = jax.random.PRNGKey(0)
    ks = jax.random.split(key, 6)
    p_lin = jnp.linspace(0.05, 0.95, E)
    params = {
        "event_locs": jax.random.normal(ks[0], (E, 3), jnp.float32),
        "event_times": jnp.log(p_lin / (1.0 - p_lin)).astype(jnp.float32),   # torch.logit(linspace)
        "model_traveltime_p": jax.random.normal(ks[1], (L,), jnp.float32),
        # frozen surrogate traveltime model: Linear(L+3 -> H) -> tanh -> Linear(H -> S)
        "tt_w1": jax.random.normal(ks[2], (H, L + 3), jnp.float32) / jnp.sqrt(L + 3.0),
        "tt_b1": 0.1 * jax.random.normal(ks[3], (H,), jnp.float32),
        "tt_w2": jax.random.normal(ks[4], (S, H), jnp.float32) / jnp.sqrt(float(H)),
        "tt_b2": 0.1 * jax.random.normal(ks[5], (S,), jnp.float32),
    }
    station_index = jnp.int32(3)

    fwd_p = make_forward(cfg, phase="P")
    t_sorted, s_index = fwd_p(params, station_index)
    t_sorted = jax.block_until_ready(t_sorted)
    s_index = jax.block_until_ready(s_index)

    ref_sorted, ref_index, ref_unsorted = assignment_reference(params, cfg, station_index, "P")
    assert t_sorted.shape == (E,) and s_index.shape == (E,), (t_sorted.shape, s_index.shape)
    assert bool(jnp.all(t_sorted[1:] >= t_sorted[:-1]))                  # ascending order
    assert bool(jnp.array_equal(jnp.sort(s_index), jnp.arange(E)))       # a valid permutation
    assert jnp.allclose(t_sorted, ref_sorted, atol=1e-2, rtol=1e-4), (t_sorted, ref_sorted)
    # indices must pair with the right (unsorted) arrival times
    assert jnp.allclose(ref_unsorted[s_index], t_sorted, atol=1e-2, rtol=1e-4)

    # S-phase path (temp / velp * vels + event_times)
    fwd_s = make_forward(cfg, phase="S")
    ts_sorted, _ = jax.block_until_ready(fwd_s(params, station_index))
    ref_s_sorted, _, _ = assignment_reference(params, cfg, station_index, "S")
    assert jnp.allclose(ts_sorted, ref_s_sorted, atol=1e-2, rtol=1e-4)

    print("KERNEL_OK")
</pallas_src>

<mosaic_0001>
module attributes {stable_mosaic.version = 11 : i64} {
  func.func @sort_kernel(%arg0: i32, %arg1: memref<1x16xf32, #tpu.memory_space<vmem>>, %arg2: memref<16x1xf32, #tpu.memory_space<vmem>>, %arg3: memref<1x16xf32, #tpu.memory_space<vmem>>, %arg4: memref<1x16xi32, #tpu.memory_space<vmem>>) attributes {dimension_semantics = [#tpu.dimension_semantics<arbitrary>], iteration_bounds = array<i64: 1>, scalar_prefetch = 0 : i64, scratch_operands = 0 : i64, tpu.core_type = #tpu.core_type<tc>, window_params = [{pipeline_mode = #tpu.pipeline_mode<synchronous>, transform_indices = @transform_0, window_bounds = array<i64: 1, 16>}, {pipeline_mode = #tpu.pipeline_mode<synchronous>, transform_indices = @transform_1, window_bounds = array<i64: 16, 1>}, {pipeline_mode = #tpu.pipeline_mode<synchronous>, transform_indices = @transform_2, window_bounds = array<i64: 1, 16>}, {pipeline_mode = #tpu.pipeline_mode<synchronous>, transform_indices = @transform_3, window_bounds = array<i64: 1, 16>}]} {
    %c0 = arith.constant 0 : index
    %c0_0 = arith.constant 0 : index
    %0 = vector.load %arg1[%c0, %c0_0] : memref<1x16xf32, #tpu.memory_space<vmem>>, vector<1x16xf32>
    %c0_1 = arith.constant 0 : index
    %c0_2 = arith.constant 0 : index
    %1 = vector.load %arg2[%c0_1, %c0_2] : memref<16x1xf32, #tpu.memory_space<vmem>>, vector<16x1xf32>
    %2 = tpu.iota {dimensions = array<i32: 0>} : vector<16x16xi32>
    %3 = tpu.iota {dimensions = array<i32: 1>} : vector<16x16xi32>
    %4 = vector.shape_cast %1 : vector<16x1xf32> to vector<16x1xf32>
    %5 = vector.broadcast %4 : vector<16x1xf32> to vector<16x16xf32>
    %6 = vector.shape_cast %0 : vector<1x16xf32> to vector<1x16xf32>
    %7 = vector.broadcast %6 : vector<1x16xf32> to vector<16x16xf32>
    %8 = arith.cmpf olt, %7, %5 : vector<16x16xf32>
    %9 = arith.cmpf oeq, %7, %5 : vector<16x16xf32>
    %10 = arith.cmpi slt, %3, %2 : vector<16x16xi32>
    %11 = arith.andi %9, %10 : vector<16x16xi1>
    %12 = arith.ori %8, %11 : vector<16x16xi1>
    %13 = arith.extui %12 : vector<16x16xi1> to vector<16x16xi32>
    %14 = arith.sitofp %13 : vector<16x16xi32> to vector<16x16xf32>
    %cst = arith.constant dense<0.000000e+00> : vector<16xf32>
    %15 = vector.multi_reduction <add>, %14, %cst [1] : vector<16x16xf32> to vector<16xf32>
    %16 = vector.shape_cast %15 : vector<16xf32> to vector<16x1xf32>
    %17 = arith.fptosi %16 : vector<16x1xf32> to vector<16x1xi32>
    %18 = vector.shape_cast %17 : vector<16x1xi32> to vector<16x1xi32>
    %19 = vector.broadcast %18 : vector<16x1xi32> to vector<16x16xi32>
    %20 = arith.cmpi eq, %19, %3 : vector<16x16xi32>
    %cst_3 = arith.constant 0.000000e+00 : f32
    %21 = vector.broadcast %cst_3 : f32 to vector<16x16xf32>
    %22 = arith.select %20, %5, %21 : vector<16x16xi1>, vector<16x16xf32>
    %cst_4 = arith.constant dense<0.000000e+00> : vector<16xf32>
    %23 = vector.multi_reduction <add>, %22, %cst_4 [0] : vector<16x16xf32> to vector<16xf32>
    %24 = vector.shape_cast %23 : vector<16xf32> to vector<1x16xf32>
    %c0_5 = arith.constant 0 : index
    %c0_6 = arith.constant 0 : index
    %25 = vector.load %arg3[%c0_5, %c0_6] : memref<1x16xf32, #tpu.memory_space<vmem>>, vector<1x16xf32>
    tpu.vector_store %arg3[%c0_5, %c0_6], %24 {strides = array<i32>} : memref<1x16xf32, #tpu.memory_space<vmem>>, vector<1x16xf32>,
    %26 = arith.sitofp %2 : vector<16x16xi32> to vector<16x16xf32>
    %cst_7 = arith.constant 0.000000e+00 : f32
    %27 = vector.broadcast %cst_7 : f32 to vector<16x16xf32>
    %28 = arith.select %20, %26, %27 : vector<16x16xi1>, vector<16x16xf32>
    %cst_8 = arith.constant dense<0.000000e+00> : vector<16xf32>
    %29 = vector.multi_reduction <add>, %28, %cst_8 [0] : vector<16x16xf32> to vector<16xf32>
    %30 = vector.shape_cast %29 : vector<16xf32> to vector<1x16xf32>
    %31 = arith.fptosi %30 : vector<1x16xf32> to vector<1x16xi32>
    %c0_9 = arith.constant 0 : index
    %c0_10 = arith.constant 0 : index
    %32 = vector.load %arg4[%c0_9, %c0_10] : memref<1x16xi32, #tpu.memory_space<vmem>>, vector<1x16xi32>
    tpu.vector_store %arg4[%c0_9, %c0_10], %31 {strides = array<i32>} : memref<1x16xi32, #tpu.memory_space<vmem>>, vector<1x16xi32>,
    return
  }
  func.func @transform_0(%arg0: i32) -> (i32, i32) {
    %c0_i32 = arith.constant 0 : i32
    %c0_i32_0 = arith.constant 0 : i32
    %c0_i32_1 = arith.constant 0 : i32
    return %c0_i32, %c0_i32_0 : i32, i32
  }
  func.func @transform_1(%arg0: i32) -> (i32, i32) {
    %c0_i32 = arith.constant 0 : i32
    %c0_i32_0 = arith.constant 0 : i32
    %c0_i32_1 = arith.constant 0 : i32
    return %c0_i32, %c0_i32_0 : i32, i32
  }
  func.func @transform_2(%arg0: i32) -> (i32, i32) {
    %c0_i32 = arith.constant 0 : i32
    %c0_i32_0 = arith.constant 0 : i32
    %c0_i32_1 = arith.constant 0 : i32
    return %c0_i32, %c0_i32_0 : i32, i32
  }
  func.func @transform_3(%arg0: i32) -> (i32, i32) {
    %c0_i32 = arith.constant 0 : i32
    %c0_i32_0 = arith.constant 0 : i32
    %c0_i32_1 = arith.constant 0 : i32
    return %c0_i32, %c0_i32_0 : i32, i32
  }
}

module attributes {stable_mosaic.version = 11 : i64} {
  func.func @kernel(%arg0: i32, %arg1: memref<16x3xf32, #tpu.memory_space<vmem>>, %arg2: memref<16x1xf32, #tpu.memory_space<vmem>>, %arg3: memref<1x32xf32, #tpu.memory_space<vmem>>, %arg4: memref<32x64xf32, #tpu.memory_space<vmem>>, %arg5: memref<3x64xf32, #tpu.memory_space<vmem>>, %arg6: memref<1x64xf32, #tpu.memory_space<vmem>>, %arg7: memref<64x8xf32, #tpu.memory_space<vmem>>, %arg8: memref<1x8xf32, #tpu.memory_space<vmem>>, %arg9: memref<8x1xf32, #tpu.memory_space<vmem>>, %arg10: memref<16x1xf32, #tpu.memory_space<vmem>>) attributes {dimension_semantics = [#tpu.dimension_semantics<arbitrary>], iteration_bounds = array<i64: 1>, scalar_prefetch = 0 : i64, scratch_operands = 0 : i64, tpu.core_type = #tpu.core_type<tc>, window_params = [{pipeline_mode = #tpu.pipeline_mode<synchronous>, transform_indices = @transform_0, window_bounds = array<i64: 16, 3>}, {pipeline_mode = #tpu.pipeline_mode<synchronous>, transform_indices = @transform_1, window_bounds = array<i64: 16, 1>}, {pipeline_mode = #tpu.pipeline_mode<synchronous>, transform_indices = @transform_2, window_bounds = array<i64: 1, 32>}, {pipeline_mode = #tpu.pipeline_mode<synchronous>, transform_indices = @transform_3, window_bounds = array<i64: 32, 64>}, {pipeline_mode = #tpu.pipeline_mode<synchronous>, transform_indices = @transform_4, window_bounds = array<i64: 3, 64>}, {pipeline_mode = #tpu.pipeline_mode<synchronous>, transform_indices = @transform_5, window_bounds = array<i64: 1, 64>}, {pipeline_mode = #tpu.pipeline_mode<synchronous>, transform_indices = @transform_6, window_bounds = array<i64: 64, 8>}, {pipeline_mode = #tpu.pipeline_mode<synchronous>, transform_indices = @transform_7, window_bounds = array<i64: 1, 8>}, {pipeline_mode = #tpu.pipeline_mode<synchronous>, transform_indices = @transform_8, window_bounds = array<i64: 8, 1>}, {pipeline_mode = #tpu.pipeline_mode<synchronous>, transform_indices = @transform_9, window_bounds = array<i64: 16, 1>}]} {
    %c0 = arith.constant 0 : index
    %c0_0 = arith.constant 0 : index
    %0 = vector.load %arg1[%c0, %c0_0] : memref<16x3xf32, #tpu.memory_space<vmem>>, vector<16x3xf32>
    %cst = arith.constant 3.000000e+00 : f32
    %1 = vector.broadcast %cst : f32 to vector<16x3xf32>
    %2 = arith.mulf %1, %0 : vector<16x3xf32>
    %3 = arith.negf %2 : vector<16x3xf32>
    %4 = math.exp %3 : vector<16x3xf32>
    %cst_1 = arith.constant 1.000000e+00 : f32
    %5 = vector.broadcast %cst_1 : f32 to vector<16x3xf32>
    %6 = arith.addf %5, %4 : vector<16x3xf32>
    %7 = arith.divf %5, %6 : vector<16x3xf32>
    %c0_2 = arith.constant 0 : index
    %c0_3 = arith.constant 0 : index
    %8 = vector.load %arg2[%c0_2, %c0_3] : memref<16x1xf32, #tpu.memory_space<vmem>>, vector<16x1xf32>
    %cst_4 = arith.constant 5.000000e+00 : f32
    %9 = vector.broadcast %cst_4 : f32 to vector<16x1xf32>
    %10 = arith.mulf %9, %8 : vector<16x1xf32>
    %11 = arith.negf %10 : vector<16x1xf32>
    %12 = math.exp %11 : vector<16x1xf32>
    %cst_5 = arith.constant 1.000000e+00 : f32
    %13 = vector.broadcast %cst_5 : f32 to vector<16x1xf32>
    %14 = arith.addf %13, %12 : vector<16x1xf32>
    %15 = arith.divf %13, %14 : vector<16x1xf32>
    %cst_6 = arith.constant 1.000000e+02 : f32
    %16 = vector.broadcast %cst_6 : f32 to vector<16x1xf32>
    %17 = arith.mulf %15, %16 : vector<16x1xf32>
    %cst_7 = arith.constant 0.000000e+00 : f32
    %18 = vector.broadcast %cst_7 : f32 to vector<16x1xf32>
    %19 = arith.addf %17, %18 : vector<16x1xf32>
    %c0_8 = arith.constant 0 : index
    %c0_9 = arith.constant 0 : index
    %20 = vector.load %arg3[%c0_8, %c0_9] : memref<1x32xf32, #tpu.memory_space<vmem>>, vector<1x32xf32>
    %cst_10 = arith.constant 2.000000e+00 : f32
    %21 = vector.broadcast %cst_10 : f32 to vector<1x32xf32>
    %22 = arith.mulf %21, %20 : vector<1x32xf32>
    %23 = arith.negf %22 : vector<1x32xf32>
    %24 = math.exp %23 : vector<1x32xf32>
    %cst_11 = arith.constant 1.000000e+00 : f32
    %25 = vector.broadcast %cst_11 : f32 to vector<1x32xf32>
    %26 = arith.addf %25, %24 : vector<1x32xf32>
    %27 = arith.divf %25, %26 : vector<1x32xf32>
    %c0_12 = arith.constant 0 : index
    %c0_13 = arith.constant 0 : index
    %28 = vector.load %arg4[%c0_12, %c0_13] : memref<32x64xf32, #tpu.memory_space<vmem>>, vector<32x64xf32>
    %cst_14 = arith.constant dense<0.000000e+00> : vector<1x64xf32>
    %29 = tpu.matmul %27, %28, %cst_14 {dimension_numbers = #tpu.dot_dimension_numbers<[1], [0], [0], [1], [0, 0, 1, 1], [], []>} : vector<1x32xf32>, vector<32x64xf32>, vector<1x64xf32> -> vector<1x64xf32>
    %c0_15 = arith.constant 0 : index
    %c0_16 = arith.constant 0 : index
    %30 = vector.load %arg5[%c0_15, %c0_16] : memref<3x64xf32, #tpu.memory_space<vmem>>, vector<3x64xf32>
    %cst_17 = arith.constant dense<0.000000e+00> : vector<16x64xf32>
    %31 = tpu.matmul %7, %30, %cst_17 {dimension_numbers = #tpu.dot_dimension_numbers<[1], [0], [0], [1], [0, 0, 1, 1], [], []>} : vector<16x3xf32>, vector<3x64xf32>, vector<16x64xf32> -> vector<16x64xf32>
    %32 = vector.broadcast %29 : vector<1x64xf32> to vector<16x64xf32>
    %33 = arith.addf %31, %32 : vector<16x64xf32>
    %c0_18 = arith.constant 0 : index
    %c0_19 = arith.constant 0 : index
    %34 = vector.load %arg6[%c0_18, %c0_19] : memref<1x64xf32, #tpu.memory_space<vmem>>, vector<1x64xf32>
    %35 = vector.broadcast %34 : vector<1x64xf32> to vector<16x64xf32>
    %36 = arith.addf %33, %35 : vector<16x64xf32>
    %37 = math.tanh %36 : vector<16x64xf32>
    %c0_20 = arith.constant 0 : index
    %c0_21 = arith.constant 0 : index
    %38 = vector.load %arg7[%c0_20, %c0_21] : memref<64x8xf32, #tpu.memory_space<vmem>>, vector<64x8xf32>
    %cst_22 = arith.constant dense<0.000000e+00> : vector<16x8xf32>
    %39 = tpu.matmul %37, %38, %cst_22 {dimension_numbers = #tpu.dot_dimension_numbers<[1], [0], [0], [1], [0, 0, 1, 1], [], []>} : vector<16x64xf32>, vector<64x8xf32>, vector<16x8xf32> -> vector<16x8xf32>
    %c0_23 = arith.constant 0 : index
    %c0_24 = arith.constant 0 : index
    %40 = vector.load %arg8[%c0_23, %c0_24] : memref<1x8xf32, #tpu.memory_space<vmem>>, vector<1x8xf32>
    %41 = vector.broadcast %40 : vector<1x8xf32> to vector<16x8xf32>
    %42 = arith.addf %39, %41 : vector<16x8xf32>
    %c0_25 = arith.constant 0 : index
    %c0_26 = arith.constant 0 : index
    %43 = vector.load %arg9[%c0_25, %c0_26] : memref<8x1xf32, #tpu.memory_space<vmem>>, vector<8x1xf32>
    %cst_27 = arith.constant dense<0.000000e+00> : vector<16x1xf32>
    %44 = tpu.matmul %42, %43, %cst_27 {dimension_numbers = #tpu.dot_dimension_numbers<[1], [0], [0], [1], [0, 0, 1, 1], [], []>} : vector<16x8xf32>, vector<8x1xf32>, vector<16x1xf32> -> vector<16x1xf32>
    %cst_28 = arith.constant 1.000000e+00 : f32
    %45 = vector.broadcast %cst_28 : f32 to vector<16x1xf32>
    %46 = arith.mulf %44, %45 : vector<16x1xf32>
    %47 = arith.addf %46, %19 : vector<16x1xf32>
    %c0_29 = arith.constant 0 : index
    %c0_30 = arith.constant 0 : index
    %48 = vector.load %arg10[%c0_29, %c0_30] : memref<16x1xf32, #tpu.memory_space<vmem>>, vector<16x1xf32>
    tpu.vector_store %arg10[%c0_29, %c0_30], %47 {strides = array<i32>} : memref<16x1xf32, #tpu.memory_space<vmem>>, vector<16x1xf32>,
    return
  }
  func.func @transform_0(%arg0: i32) -> (i32, i32) {
    %c0_i32 = arith.constant 0 : i32
    %c0_i32_0 = arith.constant 0 : i32
    %c0_i32_1 = arith.constant 0 : i32
    return %c0_i32, %c0_i32_0 : i32, i32
  }
  func.func @transform_1(%arg0: i32) -> (i32, i32) {
    %c0_i32 = arith.constant 0 : i32
    %c0_i32_0 = arith.constant 0 : i32
    %c0_i32_1 = arith.constant 0 : i32
    return %c0_i32, %c0_i32_0 : i32, i32
  }
  func.func @transform_2(%arg0: i32) -> (i32, i32) {
    %c0_i32 = arith.constant 0 : i32
    %c0_i32_0 = arith.constant 0 : i32
    %c0_i32_1 = arith.constant 0 : i32
    return %c0_i32, %c0_i32_0 : i32, i32
  }
  func.func @transform_3(%arg0: i32) -> (i32, i32) {
    %c0_i32 = arith.constant 0 : i32
    %c0_i32_0 = arith.constant 0 : i32
    %c0_i32_1 = arith.constant 0 : i32
    return %c0_i32, %c0_i32_0 : i32, i32
  }
  func.func @transform_4(%arg0: i32) -> (i32, i32) {
    %c0_i32 = arith.constant 0 : i32
    %c0_i32_0 = arith.constant 0 : i32
    %c0_i32_1 = arith.constant 0 : i32
    return %c0_i32, %c0_i32_0 : i32, i32
  }
  func.func @transform_5(%arg0: i32) -> (i32, i32) {
    %c0_i32 = arith.constant 0 : i32
    %c0_i32_0 = arith.constant 0 : i32
    %c0_i32_1 = arith.constant 0 : i32
    return %c0_i32, %c0_i32_0 : i32, i32
  }
  func.func @transform_6(%arg0: i32) -> (i32, i32) {
    %c0_i32 = arith.constant 0 : i32
    %c0_i32_0 = arith.constant 0 : i32
    %c0_i32_1 = arith.constant 0 : i32
    return %c0_i32, %c0_i32_0 : i32, i32
  }
  func.func @transform_7(%arg0: i32) -> (i32, i32) {
    %c0_i32 = arith.constant 0 : i32
    %c0_i32_0 = arith.constant 0 : i32
    %c0_i32_1 = arith.constant 0 : i32
    return %c0_i32, %c0_i32_0 : i32, i32
  }
  func.func @transform_8(%arg0: i32) -> (i32, i32) {
    %c0_i32 = arith.constant 0 : i32
    %c0_i32_0 = arith.constant 0 : i32
    %c0_i32_1 = arith.constant 0 : i32
    return %c0_i32, %c0_i32_0 : i32, i32
  }
  func.func @transform_9(%arg0: i32) -> (i32, i32) {
    %c0_i32 = arith.constant 0 : i32
    %c0_i32_0 = arith.constant 0 : i32
    %c0_i32_1 = arith.constant 0 : i32
    return %c0_i32, %c0_i32_0 : i32, i32
  }
}

</mosaic_0001>

<llo_original>
// kernel: fwd.2
$region0: #{fwd.2}
  #allocation0 [shape = 'u32[]', space=smem, size = 0x4, offset = 0x4, fixed_abs, tag = 'smem constant byte address 0x4 - core index']
  #allocation1 [shape = 'u32[72,128]{1,0:T(1,128)}', space=vmem, size = 0x9000, scoped, tag = 'internal scratch']
  %s0 = inlined_call_operand.vmem [shape: f32[16,3], index: 0, kind: input, shape index: {}]
  %s1 = inlined_call_operand.vmem [shape: f32[16,1], index: 1, kind: input, shape index: {}]
  %s2 = inlined_call_operand.vmem [shape: f32[1,32], index: 2, kind: input, shape index: {}]
  %s3 = inlined_call_operand.vmem [shape: f32[32,64], index: 3, kind: input, shape index: {}]
  %s4 = inlined_call_operand.vmem [shape: f32[3,64], index: 4, kind: input, shape index: {}]
  %s5 = inlined_call_operand.vmem [shape: f32[1,64], index: 5, kind: input, shape index: {}]
  %s6 = inlined_call_operand.vmem [shape: f32[64,8], index: 6, kind: input, shape index: {}]
  %s7 = inlined_call_operand.vmem [shape: f32[1,8], index: 7, kind: input, shape index: {}]
  %s8 = inlined_call_operand.vmem [shape: f32[8,1], index: 8, kind: input, shape index: {}]
  %s9 = inlined_call_operand.vmem [shape: f32[16,1], index: 9, kind: output, shape index: {}]
  %s10 = sld [smem:[#allocation0]]
  $region46: #{fwd.2} parent=0
    _
  %s12 = ssub.s32 1, %s10
  %s13 = scalar_select 0, %s12, %s10
  // Predicated region
  $region2: #{fwd.2} parent=0 // pred_check
    _
  $region3: #{fwd.2} parent=0 // pred_check_branch
    %15 = sbr.rel (0) target = $region5
  $region4: #{fwd.2} parent=0 // pred_region
    _
  $region5: #{fwd.2} parent=0 // pred_fallthru
    _
  // Predicated region
  $region6: #{fwd.2} parent=0 // pred_check
    _
  $region7: #{fwd.2} parent=0 // pred_check_branch
    %17 = sbr.rel (0) target = $region9
  $region8: #{fwd.2} parent=0 // pred_region
    _
  $region9: #{fwd.2} parent=0 // pred_fallthru
    _
  // Predicated region
  $region10: #{fwd.2} parent=0 // pred_check
    _
  $region11: #{fwd.2} parent=0 // pred_check_branch
    %19 = sbr.rel (0) target = $region13
  $region12: #{fwd.2} parent=0 // pred_region
    _
  $region13: #{fwd.2} parent=0 // pred_fallthru
    _
  // Predicated region
  $region14: #{fwd.2} parent=0 // pred_check
    _
  $region15: #{fwd.2} parent=0 // pred_check_branch
    %21 = sbr.rel (0) target = $region17
  $region16: #{fwd.2} parent=0 // pred_region
    _
  $region17: #{fwd.2} parent=0 // pred_fallthru
    _
  // Predicated region
  $region18: #{fwd.2} parent=0 // pred_check
    _
  $region19: #{fwd.2} parent=0 // pred_check_branch
    %23 = sbr.rel (0) target = $region21
  $region20: #{fwd.2} parent=0 // pred_region
    _
  $region21: #{fwd.2} parent=0 // pred_fallthru
    _
  // Predicated region
  $region22: #{fwd.2} parent=0 // pred_check
    _
  $region23: #{fwd.2} parent=0 // pred_check_branch
    %25 = sbr.rel (0) target = $region25
  $region24: #{fwd.2} parent=0 // pred_region
    _
  $region25: #{fwd.2} parent=0 // pred_fallthru
    _
  // Predicated region
  $region26: #{fwd.2} parent=0 // pred_check
    _
  $region27: #{fwd.2} parent=0 // pred_check_branch
    %27 = sbr.rel (0) target = $region29
  $region28: #{fwd.2} parent=0 // pred_region
    _
  $region29: #{fwd.2} parent=0 // pred_fallthru
    _
  // Predicated region
  $region30: #{fwd.2} parent=0 // pred_check
    _
  $region31: #{fwd.2} parent=0 // pred_check_branch
    %29 = sbr.rel (0) target = $region33
  $region32: #{fwd.2} parent=0 // pred_region
    _
  $region33: #{fwd.2} parent=0 // pred_fallthru
    _
  // Predicated region
  $region34: #{fwd.2} parent=0 // pred_check
    _
  $region35: #{fwd.2} parent=0 // pred_check_branch
    %31 = sbr.rel (0) target = $region37
  $region36: #{fwd.2} parent=0 // pred_region
    _
  $region37: #{fwd.2} parent=0 // pred_fallthru
    _
  %v32 = vld [vmem:[%s0] sm:$0xff]
  %v33 = vld [vmem:[%s0 + $0x8] sm:$0xff]
  %v34 = vmul.f32 %v32, 3.0
  %v35 = vmul.f32 %v33, 3.0
  %v36 = vxor.u32 %v34, 2147483648
  %v37 = vxor.u32 %v35, 2147483648
  %v38 = vmul.f32 %v36, 1.442695
  %v39 = vpow.pop %v38
  %v40 = vmul.f32 %v37, 1.442695
  %v41 = vpow.pop %v40
  %v42 = vadd.f32 %v39, 1.0
  %v43 = vadd.f32 %v41, 1.0
  %v44 = vrcp.pop %v42
  %v45 = vmul.f32 %v42, %v44
  %v46 = vsub.f32 1.0, %v45
  %v47 = vmul.f32 %v44, %v46
  %v48 = vadd.f32 %v44, %v47
  %vm49 = vweird.f32 %v42
  %vm50 = vweird.f32 %v44
  %vm51 = vmor %vm49, %vm50
  %v52 = vsel %vm51, %v44, %v48
  %v53 = vand.u32 2147483647, %v42
  %vm54 = vcmp.eq.f32.partialorder %v53, 8.507059e+37
  %v55 = vand.u32 %v42, 2147483648
  %v56 = vor.u32 1.1754944e-38, %v55
  %v57 = vsel %vm54, %v56, %v52
  %v58 = vmul.f32 1.0, %v57
  %v59 = vrcp.pop %v43
  %v60 = vmul.f32 %v43, %v59
  %v61 = vsub.f32 1.0, %v60
  %v62 = vmul.f32 %v59, %v61
  %v63 = vadd.f32 %v59, %v62
  %vm64 = vweird.f32 %v43
  %vm65 = vweird.f32 %v59
  %vm66 = vmor %vm64, %vm65
  %v67 = vsel %vm66, %v59, %v63
  %v68 = vand.u32 2147483647, %v43
  %vm69 = vcmp.eq.f32.partialorder %v68, 8.507059e+37
  %v70 = vand.u32 %v43, 2147483648
  %v71 = vor.u32 1.1754944e-38, %v70
  %v72 = vsel %vm69, %v71, %v67
  %v73 = vmul.f32 1.0, %v72
  %v74 = vld [vmem:[%s1] sm:$0xff]
  %v75 = vld [vmem:[%s1 + $0x8] sm:$0xff]
  %v76 = vmul.f32 %v74, 5.0
  %v77 = vmul.f32 %v75, 5.0
  %v78 = vxor.u32 %v76, 2147483648
  %v79 = vxor.u32 %v77, 2147483648
  %v80 = vmul.f32 %v78, 1.442695
  %v81 = vpow.pop %v80
  %v82 = vmul.f32 %v79, 1.442695
  %v83 = vpow.pop %v82
  %v84 = vadd.f32 %v81, 1.0
  %v85 = vadd.f32 %v83, 1.0
  %v86 = vrcp.pop %v84
  %v87 = vmul.f32 %v84, %v86
  %v88 = vsub.f32 1.0, %v87
  %v89 = vmul.f32 %v86, %v88
  %v90 = vadd.f32 %v86, %v89
  %vm91 = vweird.f32 %v84
  %vm92 = vweird.f32 %v86
  %vm93 = vmor %vm91, %vm92
  %v94 = vsel %vm93, %v86, %v90
  %v95 = vand.u32 2147483647, %v84
  %vm96 = vcmp.eq.f32.partialorder %v95, 8.507059e+37
  %v97 = vand.u32 %v84, 2147483648
  %v98 = vor.u32 1.1754944e-38, %v97
  %v99 = vsel %vm96, %v98, %v94
  %v100 = vmul.f32 1.0, %v99
  %v101 = vrcp.pop %v85
  %v102 = vmul.f32 %v85, %v101
  %v103 = vsub.f32 1.0, %v102
  %v104 = vmul.f32 %v101, %v103
  %v105 = vadd.f32 %v101, %v104
  %vm106 = vweird.f32 %v85
  %vm107 = vweird.f32 %v101
  %vm108 = vmor %vm106, %vm107
  %v109 = vsel %vm108, %v101, %v105
  %v110 = vand.u32 2147483647, %v85
  %vm111 = vcmp.eq.f32.partialorder %v110, 8.507059e+37
  %v112 = vand.u32 %v85, 2147483648
  %v113 = vor.u32 1.1754944e-38, %v112
  %v114 = vsel %vm111, %v113, %v109
  %v115 = vmul.f32 1.0, %v114
  %v116 = vmul.f32 %v100, 100.0
  %v117 = vmul.f32 %v115, 100.0
  %v118 = vadd.f32 %v116, 0.0
  %v119 = vadd.f32 %v117, 0.0
  %v120 = vld [vmem:[%s2] sm:$0x1]
  %v121 = vmul.f32 %v120, 2.0
  %v122 = vxor.u32 %v121, 2147483648
  %v123 = vmul.f32 %v122, 1.442695
  %v124 = vpow.pop %v123
  %v125 = vadd.f32 %v124, 1.0
  %v126 = vrcp.pop %v125
  %v127 = vmul.f32 %v125, %v126
  %v128 = vsub.f32 1.0, %v127
  %v129 = vmul.f32 %v126, %v128
  %v130 = vadd.f32 %v126, %v129
  %vm131 = vweird.f32 %v125
  %vm132 = vweird.f32 %v126
  %vm133 = vmor %vm131, %vm132
  %v134 = vsel %vm133, %v126, %v130
  %v135 = vand.u32 2147483647, %v125
  %vm136 = vcmp.eq.f32.partialorder %v135, 8.507059e+37
  %v137 = vand.u32 %v125, 2147483648
  %v138 = vor.u32 1.1754944e-38, %v137
  %v139 = vsel %vm136, %v138, %v134
  %v140 = vmul.f32 1.0, %v139
  %v141 = vld [vmem:[%s3] sm:$0xff]
  %v142 = vld [vmem:[%s3 + $0x8] sm:$0xff]
  %v143 = vld [vmem:[%s3 + $0x10] sm:$0xff]
  %v144 = vld [vmem:[%s3 + $0x18] sm:$0xff]
  %vm145 = vcmask 261120
  %v147 = vsel %vm145, %v140, 0
  %149 = vmatpush.msra.mxu0 0.0
  %150 = vmatpush.msra.mxu0 0.0
  %151 = vmatpush.msra.mxu0 0.0
  %152 = vmatpush.msra.mxu0 0.0
  %153 = vmatpush.msra.mxu0 0.0
  %154 = vmatpush.msra.mxu0 0.0
  %155 = vmatpush.msra.mxu0 0.0
  %156 = vmatpush.msra.mxu0 0.0
  %157 = vmatpush.msra.mxu0 0.0
  %158 = vmatpush.msra.mxu0 0.0
  %159 = vmatpush.msra.mxu0 0.0
  %160 = vmatpush.msra.mxu0 0.0
  %161 = vmatpush.msra.mxu0 %v144
  %162 = vmatpush.msra.mxu0 %v143
  %163 = vmatpush.msra.mxu0 %v142
  %164 = vmatpush.msra.mxu0 %v141
  %165 = vmatmul.f32.gmra.mxu0 %v147
  %v166 = vpop.f32.mrf.mxu0
  %v167 = vadd.f32 0.0, %v166
  %168 = vdwg.mxu0
  %v169 = vld [vmem:[%s4] sm:$0x7]
  %v170 = vperm.slane %v167, 0
  %vm171 = vcmask 23552
  %v173 = vsel %vm171, %v58, 0
  %v176 = vsel %vm171, %v73, 0
  %vm178 = vcmask 1042432
  %v180 = vsel %vm178, %v169, 0
  %182 = vmatpush.msra.mxu0 0.0
  %183 = vmatpush.msra.mxu0 0.0
  %184 = vmatpush.msra.mxu0 0.0
  %185 = vmatpush.msra.mxu0 0.0
  %186 = vmatpush.msra.mxu0 0.0
  %187 = vmatpush.msra.mxu0 0.0
  %188 = vmatpush.msra.mxu0 0.0
  %189 = vmatpush.msra.mxu0 0.0
  %190 = vmatpush.msra.mxu0 0.0
  %191 = vmatpush.msra.mxu0 0.0
  %192 = vmatpush.msra.mxu0 0.0
  %193 = vmatpush.msra.mxu0 0.0
  %194 = vmatpush.msra.mxu0 0.0
  %195 = vmatpush.msra.mxu0 0.0
  %196 = vmatpush.msra.mxu0 0.0
  %197 = vmatpush.msra.mxu0 %v180
  %198 = vmatmul.f32.gmra.mxu0 %v173
  %v199 = vpop.f32.mrf.mxu0
  %v200 = vadd.f32 %v170, %v199
  %201 = vmatmul.f32.gmra.mxu0 %v176
  %v202 = vpop.f32.mrf.mxu0
  %v203 = vadd.f32 %v170, %v202
  %204 = vdwg.mxu0
  %v205 = vld [vmem:[%s5] sm:$0x1]
  %v207 = vperm.slane %v205, 0
  %v209 = vadd.f32 %v200, %v207
  %v210 = vadd.f32 %v203, %v207
  %v211 = vtanh.pop %v209
  %v212 = vtanh.pop %v210
  %v213 = vld [vmem:[%s6] sm:$0xff]
  %v214 = vld [vmem:[%s6 + $0x8] sm:$0xff]
  %v215 = vld [vmem:[%s6 + $0x10] sm:$0xff]
  %v216 = vld [vmem:[%s6 + $0x18] sm:$0xff]
  %v217 = vld [vmem:[%s6 + $0x20] sm:$0xff]
  %v218 = vld [vmem:[%s6 + $0x28] sm:$0xff]
  %v219 = vld [vmem:[%s6 + $0x30] sm:$0xff]
  %v220 = vld [vmem:[%s6 + $0x38] sm:$0xff]
  %v221 = vld [vmem:[%s7] sm:$0x1]
  %v223 = vperm.slane %v221, 0
  %vm225 = vcmask 523264
  %v227 = vsel %vm225, %v211, 0
  %v230 = vsel %vm225, %v212, 0
  %232 = vmatpush.msra.mxu0 0.0
  %233 = vmatpush.msra.mxu0 0.0
  %234 = vmatpush.msra.mxu0 0.0
  %235 = vmatpush.msra.mxu0 0.0
  %236 = vmatpush.msra.mxu0 0.0
  %237 = vmatpush.msra.mxu0 0.0
  %238 = vmatpush.msra.mxu0 0.0
  %239 = vmatpush.msra.mxu0 0.0
  %240 = vmatpush.msra.mxu0 %v220
  %241 = vmatpush.msra.mxu0 %v219
  %242 = vmatpush.msra.mxu0 %v218
  %243 = vmatpush.msra.mxu0 %v217
  %244 = vmatpush.msra.mxu0 %v216
  %245 = vmatpush.msra.mxu0 %v215
  %246 = vmatpush.msra.mxu0 %v214
  %247 = vmatpush.msra.mxu0 %v213
  %248 = vmatmul.f32.gmra.mxu0 %v227
  %v249 = vpop.f32.mrf.mxu0
  %v250 = vadd.f32 %v223, %v249
  %251 = vmatmul.f32.gmra.mxu0 %v230
  %v252 = vpop.f32.mrf.mxu0
  %v253 = vadd.f32 %v223, %v252
  %254 = vdwg.mxu0
  %v255 = vld [vmem:[%s8] sm:$0xff]
  %vm256 = vcmask 64512
  %v258 = vsel %vm256, %v250, 0
  %v261 = vsel %vm256, %v253, 0
  %263 = vmatpush.msra.mxu0 0.0
  %264 = vmatpush.msra.mxu0 0.0
  %265 = vmatpush.msra.mxu0 0.0
  %266 = vmatpush.msra.mxu0 0.0
  %267 = vmatpush.msra.mxu0 0.0
  %268 = vmatpush.msra.mxu0 0.0
  %269 = vmatpush.msra.mxu0 0.0
  %270 = vmatpush.msra.mxu0 0.0
  %271 = vmatpush.msra.mxu0 0.0
  %272 = vmatpush.msra.mxu0 0.0
  %273 = vmatpush.msra.mxu0 0.0
  %274 = vmatpush.msra.mxu0 0.0
  %275 = vmatpush.msra.mxu0 0.0
  %276 = vmatpush.msra.mxu0 0.0
  %277 = vmatpush.msra.mxu0 0.0
  %278 = vmatpush.msra.mxu0 %v255
  %279 = vmatmul.f32.gmra.mxu0 %v258
  %v280 = vpop.f32.mrf.mxu0
  %v281 = vadd.f32 %v118, %v280
  %282 = vmatmul.f32.gmra.mxu0 %v261
  %v283 = vpop.f32.mrf.mxu0
  %v284 = vadd.f32 %v119, %v283
  %285 = vdwg.mxu0
  %vm286 = vcmask 7168
  %287 = vst.msk [vmem:[%s9] sm:$0xff] %vm286, %v281
  %288 = vst.msk [vmem:[%s9 + $0x8] sm:$0xff] %vm286, %v284
  // Predicated region
  $region38: #{fwd.2} parent=0 // pred_check
    _
  $region39: #{fwd.2} parent=0 // pred_check_branch
    %290 = sbr.rel (0) target = $region41
  $region40: #{fwd.2} parent=0 // pred_region
    _
  $region41: #{fwd.2} parent=0 // pred_fallthru
    _
  // Predicated region
  $region42: #{fwd.2} parent=0 // pred_check
    _
  $region43: #{fwd.2} parent=0 // pred_check_branch
    %292 = sbr.rel (0) target = $region45
  $region44: #{fwd.2} parent=0 // pred_region
    _
  $region45: #{fwd.2} parent=0 // pred_fallthru
    _

// kernel: fwd.3
$region0: #{fwd.3}
  #allocation0 [shape = 'u32[]', space=smem, size = 0x4, offset = 0x4, fixed_abs, tag = 'smem constant byte address 0x4 - core index']
  #allocation1 [shape = 'u32[72,128]{1,0:T(1,128)}', space=vmem, size = 0x9000, scoped, tag = 'internal scratch']
  %s0 = inlined_call_operand.vmem [shape: f32[1,16], index: 0, kind: input, shape index: {}]
  %s1 = inlined_call_operand.vmem [shape: f32[16,1], index: 1, kind: input, shape index: {}]
  %s2 = inlined_call_operand.hbm [shape: f32[1,16], index: 2, kind: output, shape index: {0}]
  %s3 = inlined_call_operand.hbm [shape: s32[1,16], index: 3, kind: output, shape index: {1}]
  %4 = xla_tuple %s2, %s3
  %s5 = sld [smem:[#allocation0]]
  $region26: #{fwd.3} parent=0
    _
  %s7 = ssub.s32 1, %s5
  %s8 = scalar_select 0, %s7, %s5
  $region1: #{fwd.3} parent=0
    #allocation2 [shape = 'u8[512]{0}', space=vmem, size = 0x400, scoped, tag = 'output window, operand 0, single buffered']
    #allocation3 [shape = 's32[1]{0}', space=sflag, size = 0x4, scoped, tag = 'scoped memory for fwd.3']
    #allocation4 [shape = 'u8[512]{0}', space=vmem, size = 0x400, scoped, tag = 'output window, operand 1, single buffered']
    #allocation5 [shape = 's32[1]{0}', space=sflag, size = 0x4, scoped, tag = 'scoped memory for fwd.3']
    %9 = vsyncpa [#allocation3], 0
    %10 = vsyncpa [#allocation5], 0
    // Predicated region
    $region2: #{fwd.3} parent=1 // pred_check
      _
    $region3: #{fwd.3} parent=1 // pred_check_branch
      %12 = sbr.rel (0) target = $region5
    $region4: #{fwd.3} parent=1 // pred_region
      _
    $region5: #{fwd.3} parent=1 // pred_fallthru
      _
    // Predicated region
    $region6: #{fwd.3} parent=1 // pred_check
      _
    $region7: #{fwd.3} parent=1 // pred_check_branch
      %14 = sbr.rel (0) target = $region9
    $region8: #{fwd.3} parent=1 // pred_region
      _
    $region9: #{fwd.3} parent=1 // pred_fallthru
      _
    %v15 = vld [vmem:[%s0] sm:$0x1]
    %v16 = vld [vmem:[%s1] sm:$0xff]
    %v17 = vld [vmem:[%s1 + $0x8] sm:$0xff]
    %v18 = vlaneseq
    %v19 = vshrl.u32 %v18, 7
    %v20 = vadd.s32 %v19, 8
    %v21 = vlaneseq
    %v22 = vand.u32 %v21, 127
    %24 = vset.pattern.permute.xlu0 0
    %25 = vperm.xlu0 %24, %v16
    %v26 = vpop.permute.xlu0 %25
    %29 = vset.pattern.permute.xlu0 0
    %30 = vperm.xlu0 %29, %v17
    %v31 = vpop.permute.xlu0 %30
    %v34 = vperm.slane %v15, 0
    %vm36 = vcmp.lt.f32.partialorder %v34, %v26
    %vm37 = vcmp.lt.f32.partialorder %v34, %v31
    %vm38 = vcmp.eq.f32.partialorder %v34, %v26
    %vm39 = vcmp.eq.f32.partialorder %v34, %v31
    %vm40 = vcmp.lt.s32.totalorder %v22, %v19
    %vm41 = vcmp.lt.s32.totalorder %v22, %v20
    %vm42 = vmand %vm38, %vm40
    %vm43 = vmand %vm39, %vm41
    %vm44 = vmor %vm36, %vm42
    %vm45 = vmor %vm37, %vm43
    %v46 = vsel %vm44, 1, 0
    %v47 = vsel %vm45, 1, 0
    %v48 = vcvt.s32.f32 %v46
    %v49 = vcvt.s32.f32 %v47
    %vm50 = vcmask 130048
    %v51 = vsel %vm50, %v48, 0.0
    %52 = vadd.xlane.f32.xlu0 %v51
    %v53 = vpop.xlane.xlu0 %52
    %v54 = vsel %vm50, %v49, 0.0
    %55 = vadd.xlane.f32.xlu0 %v54
    %v56 = vpop.xlane.xlu0 %55
    %v57 = vcvt.f32.s32.to.zero.pseudo %v53
    %v58 = vcvt.f32.s32.to.zero.pseudo %v56
    %vm59 = vcmp.eq.s32.totalorder %v57, %v22
    %vm60 = vcmp.eq.s32.totalorder %v58, %v22
    %v61 = vsel %vm59, %v26, 0.0
    %v62 = vsel %vm60, %v31, 0.0
    %v63 = vsel %vm50, %v61, 0.0
    %v64 = vsel %vm50, %v62, 0.0
    %v65 = vadd.f32 %v63, %v64
    %v66 = vrot.slane %v65, 4
    %v67 = vadd.f32 %v65, %v66
    %v68 = vrot.slane %v67, 2
    %v69 = vadd.f32 %v67, %v68
    %v70 = vrot.slane %v69, 1
    %v71 = vadd.f32 %v69, %v70
    %vm72 = vcmask 122880
    %73 = vst.msk [vmem:[#allocation2] sm:$0x1] %vm72, %v71
    %v74 = vcvt.s32.f32 %v19
    %v75 = vcvt.s32.f32 %v20
    %v76 = vsel %vm59, %v74, 0.0
    %v77 = vsel %vm60, %v75, 0.0
    %v78 = vsel %vm50, %v76, 0.0
    %v79 = vsel %vm50, %v77, 0.0
    %v80 = vadd.f32 %v78, %v79
    %v81 = vrot.slane %v80, 4
    %v82 = vadd.f32 %v80, %v81
    %v83 = vrot.slane %v82, 2
    %v84 = vadd.f32 %v82, %v83
    %v85 = vrot.slane %v84, 1
    %v86 = vadd.f32 %v84, %v85
    %v87 = vcvt.f32.s32.to.zero.pseudo %v86
    %88 = vst.msk [vmem:[#allocation4] sm:$0x1] %vm72, %v87
    // Predicated region
    $region10: #{fwd.3} parent=1 // pred_check
      _
    $region11: #{fwd.3} parent=1 // pred_check_branch
      %90 = sbr.rel (0) target = $region13
    $region12: #{fwd.3} parent=1 // pred_region
      %92 = vsyncadd [#allocation3], 0
      %s94 = sshll.u32 [#allocation2], 4
      %s95 = int_to_ptr.vmem [resolvable:$true] %s94
      %s96 = sshll.u32 %s2, 4
      %s97 = int_to_ptr.hbm [resolvable:$true] %s96
      %99 = dma.vmem_to_hbm [thread:$0]  %s95, 16, %s97, [#allocation3]
    $region13: #{fwd.3} parent=1 // pred_fallthru
      _
    // Predicated region
    $region14: #{fwd.3} parent=1 // pred_check
      _
    $region15: #{fwd.3} parent=1 // pred_check_branch
      %101 = sbr.rel (0) target = $region17
    $region16: #{fwd.3} parent=1 // pred_region
      %103 = vsyncadd [#allocation5], 0
      %s105 = sshll.u32 [#allocation4], 4
      %s106 = int_to_ptr.vmem [resolvable:$true] %s105
      %s107 = sshll.u32 %s3, 4
      %s108 = int_to_ptr.hbm [resolvable:$true] %s107
      %110 = dma.vmem_to_hbm [thread:$0]  %s106, 16, %s108, [#allocation5]
    $region17: #{fwd.3} parent=1 // pred_fallthru
      _
    // Predicated region
    $region18: #{fwd.3} parent=1 // pred_check
      _
    $region19: #{fwd.3} parent=1 // pred_check_branch
      %112 = sbr.rel (0) target = $region21
    $region20: #{fwd.3} parent=1 // pred_region
      %114 = dma.done [#allocation3], 16
    $region21: #{fwd.3} parent=1 // pred_fallthru
      _
    // Predicated region
    $region22: #{fwd.3} parent=1 // pred_check
      _
    $region23: #{fwd.3} parent=1 // pred_check_branch
      %116 = sbr.rel (0) target = $region25
    $region24: #{fwd.3} parent=1 // pred_region
      %118 = dma.done [#allocation5], 16
    $region25: #{fwd.3} parent=1 // pred_fallthru
      _
    %119 = vsyncpa [#allocation3], 1
    %120 = vsyncpa [#allocation5], 1

</llo_original>
